<compile_context>
chip_gen: v6e
topology: v6e:2x2x1
jax: 0.10.0
libtpu: 0.0.40
codegen_flags: <defaults>
</compile_context>

<pallas_src>
import functools
import math

import jax
import jax.numpy as jnp
from jax.experimental import pallas as pl
from jax.experimental.pallas import tpu as pltpu

LANE = 128  # lane width: pad out_channels to a multiple of this for unmasked stores


def _gspectral_kernel(xh_ref, xc_ref, xs_ref, gh_ref, gc_ref, gs_ref,
                      w_ref, b_ref, oh_ref, oc_ref, os_ref):
    # x*_ref: (N, c_in)       bf16 node features (full N; tiny)
    # g*_ref: (TM, N)         bf16 rows of the dense GCN smoothing operator
    # w_ref : (3, c_in, Cp)   bf16 pre-transposed, zero-padded Linear weights
    # b_ref : (3, 1, Cp)      f32 zero-padded Linear biases
    # o*_ref: (TM, Cp)        f32 outputs (lane-dense: Cp % 128 == 0)
    branches = ((xh_ref, gh_ref, oh_ref, 0),
                (xc_ref, gc_ref, oc_ref, 1),
                (xs_ref, gs_ref, os_ref, 2))
    for x_ref, g_ref, o_ref, k in branches:
        # Linear: Y = X @ W_k + b_k   (bf16 MXU inputs, f32 accumulate, f32 bias add)
        y = jnp.dot(x_ref[...], w_ref[k],
                    preferred_element_type=jnp.float32) + b_ref[k]
        # GCN Laplacian smoothing for this row tile:  G[rows] @ Y
        o_ref[...] = jnp.dot(g_ref[...], y.astype(jnp.bfloat16),
                             preferred_element_type=jnp.float32)


@functools.partial(jax.jit, static_argnames=("out_channels",))
def gspectral_net(x_hyp, x_cg, x_sg, g_hyp, g_c, g_s, w_packed, b_packed, *,
                  out_channels):
    """Pallas implementation of GSpectralNet.forward.

    X_* : (N, in_channels) node features
    G_* : (N, N) dense GCN smoothing matrices
    w_packed / b_packed : from `pack_params` (done once, outside the hot path)
    Returns (X_hyp_s, X_cg_s, X_sg_s), each (N, out_channels) float32."""
    N, c_in = x_hyp.shape
    c_pad = w_packed.shape[-1]

    # Row tile over the dominant (N, N) operand; a single grid step at small N.
    # TODO(synk): for N > 512 this requires N % 512 == 0 (no ragged-tail handling).
    tm = N if N <= 512 else 512
    assert N % tm == 0
    n_tiles = N // tm

    # bf16 MXU inputs (ideally already produced in bf16 upstream).
    xs = [x.astype(jnp.bfloat16) for x in (x_hyp, x_cg, x_sg)]
    gs = [g.astype(jnp.bfloat16) for g in (g_hyp, g_c, g_s)]

    cost = pl.CostEstimate(
        flops=3 * (n_tiles * 2 * N * c_in * c_pad + 2 * N * N * c_pad),
        transcendentals=0,
        bytes_accessed=(2 * 3 * (N * c_in + N * N)          # bf16 X and G
                        + 2 * w_packed.size + 4 * b_packed.size
                        + 4 * 3 * N * c_pad),                # f32 outputs
    )

    x_spec = pl.BlockSpec((N, c_in), lambda i: (0, 0))
    g_spec = pl.BlockSpec((tm, N), lambda i: (i, 0))
    out_spec = pl.BlockSpec((tm, c_pad), lambda i: (i, 0))

    outs = pl.pallas_call(
        _gspectral_kernel,
        out_shape=tuple(jax.ShapeDtypeStruct((N, c_pad), jnp.float32)
                        for _ in range(3)),
        grid=(n_tiles,),
        in_specs=[x_spec, x_spec, x_spec,
                  g_spec, g_spec, g_spec,
                  pl.BlockSpec((3, c_in, c_pad), lambda i: (0, 0, 0)),
                  pl.BlockSpec((3, 1, c_pad), lambda i: (0, 0, 0))],
        out_specs=(out_spec, out_spec, out_spec),
        compiler_params=pltpu.CompilerParams(
            dimension_semantics=("parallel",)),   # row tiles are independent
        cost_estimate=cost,
    )(*xs, *gs, w_packed, b_packed)

    # Slice the lane-padded outputs back to the true out_channels.
    return tuple(o[:, :out_channels] for o in outs)


def init_params(key, in_ch, out_ch):
    """Deterministic synthetic parameters matching the PyTorch module's shapes."""
    ks = jax.random.split(key, 3)

    def lin(k):
        k1, k2 = jax.random.split(k)
        bound = 1.0 / math.sqrt(in_ch)
        w = jax.random.uniform(k1, (out_ch, in_ch), jnp.float32, -bound, bound)
        b = jax.random.uniform(k2, (out_ch,), jnp.float32, -bound, bound)
        return w, b

    w_hyp, b_hyp = lin(ks[0])   # theta_hyp
    w_cg, b_cg = lin(ks[1])     # theta_cg
    w_sg, b_sg = lin(ks[2])     # theta_sg
    return dict(w_hyp=w_hyp, b_hyp=b_hyp,
                w_cg=w_cg, b_cg=b_cg,
                w_sg=w_sg, b_sg=b_sg)


def pack_params(params):
    """One-time packing, hoisted out of the per-call path: transpose to
    (c_in, c_out), zero-pad c_out to a lane-dense multiple of 128, stack the
    three branches.  Returns (w_packed bf16 (3, c_in, Cp), b_packed f32 (3, 1, Cp))."""
    w_list = [params["w_hyp"], params["w_cg"], params["w_sg"]]
    b_list = [params["b_hyp"], params["b_cg"], params["b_sg"]]
    out_ch, _ = w_list[0].shape
    c_pad = max(LANE, ((out_ch + LANE - 1) // LANE) * LANE)
    pad = c_pad - out_ch
    w_packed = jnp.stack([jnp.pad(w.T, ((0, 0), (0, pad))) for w in w_list])
    b_packed = jnp.stack([jnp.pad(b, (0, pad)).reshape(1, c_pad) for b in b_list])
    return w_packed.astype(jnp.bfloat16), b_packed.astype(jnp.float32)


def gcn_smoothing_matrix(key, n, p=0.3):
    """Dense D^-1/2 (A + I) D^-1/2 for a random symmetric adjacency (what
    smoothing_with_GCN applies)."""
    a = (jax.random.uniform(key, (n, n)) < p).astype(jnp.float32)
    a = jnp.maximum(a, a.T)                       # symmetric adjacency
    eye = jnp.eye(n, dtype=jnp.float32)
    a_hat = a * (1.0 - eye) + eye                 # add self-loops
    d_inv_sqrt = 1.0 / jnp.sqrt(a_hat.sum(axis=1))
    return a_hat * d_inv_sqrt[:, None] * d_inv_sqrt[None, :]


def gspectral_ref(x_hyp, x_cg, x_sg, g_hyp, g_c, g_s, p):
    """Pure-JAX f32 reference mirroring the PyTorch forward (for validation)."""
    def branch(x, g, w, b):
        return g @ (x @ w.T + b)
    return (branch(x_hyp, g_hyp, p["w_hyp"], p["b_hyp"]),
            branch(x_cg, g_c, p["w_cg"], p["b_cg"]),
            branch(x_sg, g_s, p["w_sg"], p["b_sg"]))


if __name__ == "__main__":
    N, in_ch, out_ch = 64, 32, 16

    key = jax.random.PRNGKey(0)
    kp, kx1, kx2, kx3, kg1, kg2, kg3 = jax.random.split(key, 7)
    params = init_params(kp, in_ch, out_ch)
    # Param packing happens exactly once, outside the per-forward-call path.
    w_packed, b_packed = pack_params(params)
    w_packed, b_packed = jax.device_put(w_packed), jax.device_put(b_packed)

    x_hyp = jax.random.normal(kx1, (N, in_ch), jnp.float32)
    x_cg = jax.random.normal(kx2, (N, in_ch), jnp.float32)
    x_sg = jax.random.normal(kx3, (N, in_ch), jnp.float32)
    g_hyp = gcn_smoothing_matrix(kg1, N)
    g_c = gcn_smoothing_matrix(kg2, N)
    g_s = gcn_smoothing_matrix(kg3, N)

    outs = gspectral_net(x_hyp, x_cg, x_sg, g_hyp, g_c, g_s,
                         w_packed, b_packed, out_channels=out_ch)
    outs = jax.block_until_ready(outs)

    refs = gspectral_ref(x_hyp, x_cg, x_sg, g_hyp, g_c, g_s, params)
    for o, r in zip(outs, refs):
        assert o.shape == (N, out_ch), o.shape
        # bf16 MXU inputs -> looser tolerance than the pure-f32 reference.
        assert jnp.allclose(o, r, rtol=5e-2, atol=2e-2), \
            "Pallas kernel mismatch vs reference"

    print("KERNEL_OK")
</pallas_src>

<mosaic_0001>
module attributes {stable_mosaic.version = 11 : i64} {
  func.func @_gspectral_kernel(%arg0: i32, %arg1: memref<64x32xbf16, #tpu.memory_space<vmem>>, %arg2: memref<64x32xbf16, #tpu.memory_space<vmem>>, %arg3: memref<64x32xbf16, #tpu.memory_space<vmem>>, %arg4: memref<64x64xbf16, #tpu.memory_space<vmem>>, %arg5: memref<64x64xbf16, #tpu.memory_space<vmem>>, %arg6: memref<64x64xbf16, #tpu.memory_space<vmem>>, %arg7: memref<3x32x128xbf16, #tpu.memory_space<vmem>>, %arg8: memref<3x1x128xf32, #tpu.memory_space<vmem>>, %arg9: memref<64x128xf32, #tpu.memory_space<vmem>>, %arg10: memref<64x128xf32, #tpu.memory_space<vmem>>, %arg11: memref<64x128xf32, #tpu.memory_space<vmem>>) attributes {dimension_semantics = [#tpu.dimension_semantics<parallel>], iteration_bounds = array<i64: 1>, scalar_prefetch = 0 : i64, scratch_operands = 0 : i64, tpu.core_type = #tpu.core_type<tc>, window_params = [{pipeline_mode = #tpu.pipeline_mode<synchronous>, transform_indices = @transform_0, window_bounds = array<i64: 64, 32>}, {pipeline_mode = #tpu.pipeline_mode<synchronous>, transform_indices = @transform_1, window_bounds = array<i64: 64, 32>}, {pipeline_mode = #tpu.pipeline_mode<synchronous>, transform_indices = @transform_2, window_bounds = array<i64: 64, 32>}, {transform_indices = @transform_3, window_bounds = array<i64: 64, 64>}, {transform_indices = @transform_4, window_bounds = array<i64: 64, 64>}, {transform_indices = @transform_5, window_bounds = array<i64: 64, 64>}, {pipeline_mode = #tpu.pipeline_mode<synchronous>, transform_indices = @transform_6, window_bounds = array<i64: 3, 32, 128>}, {pipeline_mode = #tpu.pipeline_mode<synchronous>, transform_indices = @transform_7, window_bounds = array<i64: 3, 1, 128>}, {transform_indices = @transform_8, window_bounds = array<i64: 64, 128>}, {transform_indices = @transform_9, window_bounds = array<i64: 64, 128>}, {transform_indices = @transform_10, window_bounds = array<i64: 64, 128>}]} {
    %c0 = arith.constant 0 : index
    %c0_0 = arith.constant 0 : index
    %0 = vector.load %arg1[%c0, %c0_0] : memref<64x32xbf16, #tpu.memory_space<vmem>>, vector<64x32xbf16>
    %c0_1 = arith.constant 0 : index
    %c0_2 = arith.constant 0 : index
    %c0_3 = arith.constant 0 : index
    %1 = vector.load %arg7[%c0_1, %c0_2, %c0_3] : memref<3x32x128xbf16, #tpu.memory_space<vmem>>, vector<1x32x128xbf16>
    %2 = vector.shape_cast %1 : vector<1x32x128xbf16> to vector<32x128xbf16>
    %cst = arith.constant dense<0.000000e+00> : vector<64x128xf32>
    %3 = tpu.matmul %0, %2, %cst {dimension_numbers = #tpu.dot_dimension_numbers<[1], [0], [0], [1], [0, 0, 1, 1], [], []>} : vector<64x32xbf16>, vector<32x128xbf16>, vector<64x128xf32> -> vector<64x128xf32>
    %c0_4 = arith.constant 0 : index
    %c0_5 = arith.constant 0 : index
    %c0_6 = arith.constant 0 : index
    %4 = vector.load %arg8[%c0_4, %c0_5, %c0_6] : memref<3x1x128xf32, #tpu.memory_space<vmem>>, vector<1x1x128xf32>
    %5 = vector.shape_cast %4 : vector<1x1x128xf32> to vector<1x128xf32>
    %6 = vector.broadcast %5 : vector<1x128xf32> to vector<64x128xf32>
    %7 = arith.addf %3, %6 : vector<64x128xf32>
    %c0_7 = arith.constant 0 : index
    %c0_8 = arith.constant 0 : index
    %8 = vector.load %arg4[%c0_7, %c0_8] : memref<64x64xbf16, #tpu.memory_space<vmem>>, vector<64x64xbf16>
    %9 = arith.truncf %7 : vector<64x128xf32> to vector<64x128xbf16>
    %cst_9 = arith.constant dense<0.000000e+00> : vector<64x128xf32>
    %10 = tpu.matmul %8, %9, %cst_9 {dimension_numbers = #tpu.dot_dimension_numbers<[1], [0], [0], [1], [0, 0, 1, 1], [], []>} : vector<64x64xbf16>, vector<64x128xbf16>, vector<64x128xf32> -> vector<64x128xf32>
    %c0_10 = arith.constant 0 : index
    %c0_11 = arith.constant 0 : index
    %11 = vector.load %arg9[%c0_10, %c0_11] : memref<64x128xf32, #tpu.memory_space<vmem>>, vector<64x128xf32>
    tpu.vector_store %arg9[%c0_10, %c0_11], %10 {strides = array<i32>} : memref<64x128xf32, #tpu.memory_space<vmem>>, vector<64x128xf32>,
    %c0_12 = arith.constant 0 : index
    %c0_13 = arith.constant 0 : index
    %12 = vector.load %arg2[%c0_12, %c0_13] : memref<64x32xbf16, #tpu.memory_space<vmem>>, vector<64x32xbf16>
    %c1 = arith.constant 1 : index
    %c0_14 = arith.constant 0 : index
    %c0_15 = arith.constant 0 : index
    %13 = vector.load %arg7[%c1, %c0_14, %c0_15] : memref<3x32x128xbf16, #tpu.memory_space<vmem>>, vector<1x32x128xbf16>
    %14 = vector.shape_cast %13 : vector<1x32x128xbf16> to vector<32x128xbf16>
    %cst_16 = arith.constant dense<0.000000e+00> : vector<64x128xf32>
    %15 = tpu.matmul %12, %14, %cst_16 {dimension_numbers = #tpu.dot_dimension_numbers<[1], [0], [0], [1], [0, 0, 1, 1], [], []>} : vector<64x32xbf16>, vector<32x128xbf16>, vector<64x128xf32> -> vector<64x128xf32>
    %c1_17 = arith.constant 1 : index
    %c0_18 = arith.constant 0 : index
    %c0_19 = arith.constant 0 : index
    %16 = vector.load %arg8[%c1_17, %c0_18, %c0_19] : memref<3x1x128xf32, #tpu.memory_space<vmem>>, vector<1x1x128xf32>
    %17 = vector.shape_cast %16 : vector<1x1x128xf32> to vector<1x128xf32>
    %18 = vector.broadcast %17 : vector<1x128xf32> to vector<64x128xf32>
    %19 = arith.addf %15, %18 : vector<64x128xf32>
    %c0_20 = arith.constant 0 : index
    %c0_21 = arith.constant 0 : index
    %20 = vector.load %arg5[%c0_20, %c0_21] : memref<64x64xbf16, #tpu.memory_space<vmem>>, vector<64x64xbf16>
    %21 = arith.truncf %19 : vector<64x128xf32> to vector<64x128xbf16>
    %cst_22 = arith.constant dense<0.000000e+00> : vector<64x128xf32>
    %22 = tpu.matmul %20, %21, %cst_22 {dimension_numbers = #tpu.dot_dimension_numbers<[1], [0], [0], [1], [0, 0, 1, 1], [], []>} : vector<64x64xbf16>, vector<64x128xbf16>, vector<64x128xf32> -> vector<64x128xf32>
    %c0_23 = arith.constant 0 : index
    %c0_24 = arith.constant 0 : index
    %23 = vector.load %arg10[%c0_23, %c0_24] : memref<64x128xf32, #tpu.memory_space<vmem>>, vector<64x128xf32>
    tpu.vector_store %arg10[%c0_23, %c0_24], %22 {strides = array<i32>} : memref<64x128xf32, #tpu.memory_space<vmem>>, vector<64x128xf32>,
    %c0_25 = arith.constant 0 : index
    %c0_26 = arith.constant 0 : index
    %24 = vector.load %arg3[%c0_25, %c0_26] : memref<64x32xbf16, #tpu.memory_space<vmem>>, vector<64x32xbf16>
    %c2 = arith.constant 2 : index
    %c0_27 = arith.constant 0 : index
    %c0_28 = arith.constant 0 : index
    %25 = vector.load %arg7[%c2, %c0_27, %c0_28] : memref<3x32x128xbf16, #tpu.memory_space<vmem>>, vector<1x32x128xbf16>
    %26 = vector.shape_cast %25 : vector<1x32x128xbf16> to vector<32x128xbf16>
    %cst_29 = arith.constant dense<0.000000e+00> : vector<64x128xf32>
    %27 = tpu.matmul %24, %26, %cst_29 {dimension_numbers = #tpu.dot_dimension_numbers<[1], [0], [0], [1], [0, 0, 1, 1], [], []>} : vector<64x32xbf16>, vector<32x128xbf16>, vector<64x128xf32> -> vector<64x128xf32>
    %c2_30 = arith.constant 2 : index
    %c0_31 = arith.constant 0 : index
    %c0_32 = arith.constant 0 : index
    %28 = vector.load %arg8[%c2_30, %c0_31, %c0_32] : memref<3x1x128xf32, #tpu.memory_space<vmem>>, vector<1x1x128xf32>
    %29 = vector.shape_cast %28 : vector<1x1x128xf32> to vector<1x128xf32>
    %30 = vector.broadcast %29 : vector<1x128xf32> to vector<64x128xf32>
    %31 = arith.addf %27, %30 : vector<64x128xf32>
    %c0_33 = arith.constant 0 : index
    %c0_34 = arith.constant 0 : index
    %32 = vector.load %arg6[%c0_33, %c0_34] : memref<64x64xbf16, #tpu.memory_space<vmem>>, vector<64x64xbf16>
    %33 = arith.truncf %31 : vector<64x128xf32> to vector<64x128xbf16>
    %cst_35 = arith.constant dense<0.000000e+00> : vector<64x128xf32>
    %34 = tpu.matmul %32, %33, %cst_35 {dimension_numbers = #tpu.dot_dimension_numbers<[1], [0], [0], [1], [0, 0, 1, 1], [], []>} : vector<64x64xbf16>, vector<64x128xbf16>, vector<64x128xf32> -> vector<64x128xf32>
    %c0_36 = arith.constant 0 : index
    %c0_37 = arith.constant 0 : index
    %35 = vector.load %arg11[%c0_36, %c0_37] : memref<64x128xf32, #tpu.memory_space<vmem>>, vector<64x128xf32>
    tpu.vector_store %arg11[%c0_36, %c0_37], %34 {strides = array<i32>} : memref<64x128xf32, #tpu.memory_space<vmem>>, vector<64x128xf32>,
    return
  }
  func.func @transform_0(%arg0: i32) -> (i32, i32) {
    %c0_i32 = arith.constant 0 : i32
    %c0_i32_0 = arith.constant 0 : i32
    %c0_i32_1 = arith.constant 0 : i32
    return %c0_i32, %c0_i32_0 : i32, i32
  }
  func.func @transform_1(%arg0: i32) -> (i32, i32) {
    %c0_i32 = arith.constant 0 : i32
    %c0_i32_0 = arith.constant 0 : i32
    %c0_i32_1 = arith.constant 0 : i32
    return %c0_i32, %c0_i32_0 : i32, i32
  }
  func.func @transform_2(%arg0: i32) -> (i32, i32) {
    %c0_i32 = arith.constant 0 : i32
    %c0_i32_0 = arith.constant 0 : i32
    %c0_i32_1 = arith.constant 0 : i32
    return %c0_i32, %c0_i32_0 : i32, i32
  }
  func.func @transform_3(%arg0: i32) -> (i32, i32) {
    %c0_i32 = arith.constant 0 : i32
    %c0_i32_0 = arith.constant 0 : i32
    return %arg0, %c0_i32 : i32, i32
  }
  func.func @transform_4(%arg0: i32) -> (i32, i32) {
    %c0_i32 = arith.constant 0 : i32
    %c0_i32_0 = arith.constant 0 : i32
    return %arg0, %c0_i32 : i32, i32
  }
  func.func @transform_5(%arg0: i32) -> (i32, i32) {
    %c0_i32 = arith.constant 0 : i32
    %c0_i32_0 = arith.constant 0 : i32
    return %arg0, %c0_i32 : i32, i32
  }
  func.func @transform_6(%arg0: i32) -> (i32, i32, i32) {
    %c0_i32 = arith.constant 0 : i32
    %c0_i32_0 = arith.constant 0 : i32
    %c0_i32_1 = arith.constant 0 : i32
    %c0_i32_2 = arith.constant 0 : i32
    return %c0_i32, %c0_i32_0, %c0_i32_1 : i32, i32, i32
  }
  func.func @transform_7(%arg0: i32) -> (i32, i32, i32) {
    %c0_i32 = arith.constant 0 : i32
    %c0_i32_0 = arith.constant 0 : i32
    %c0_i32_1 = arith.constant 0 : i32
    %c0_i32_2 = arith.constant 0 : i32
    return %c0_i32, %c0_i32_0, %c0_i32_1 : i32, i32, i32
  }
  func.func @transform_8(%arg0: i32) -> (i32, i32) {
    %c0_i32 = arith.constant 0 : i32
    %c0_i32_0 = arith.constant 0 : i32
    return %arg0, %c0_i32 : i32, i32
  }
  func.func @transform_9(%arg0: i32) -> (i32, i32) {
    %c0_i32 = arith.constant 0 : i32
    %c0_i32_0 = arith.constant 0 : i32
    return %arg0, %c0_i32 : i32, i32
  }
  func.func @transform_10(%arg0: i32) -> (i32, i32) {
    %c0_i32 = arith.constant 0 : i32
    %c0_i32_0 = arith.constant 0 : i32
    return %arg0, %c0_i32 : i32, i32
  }
}

</mosaic_0001>

<llo_original>
// kernel: gspectral_net.1
$region0: #{gspectral_net.1}
  #allocation0 [shape = 'u32[]', space=smem, size = 0x4, offset = 0x4, fixed_abs, tag = 'smem constant byte address 0x4 - core index']
  #allocation1 [shape = 'u32[144,128]{1,0:T(1,128)}', space=vmem, size = 0x12000, scoped, tag = 'internal scratch']
  %s0 = inlined_call_operand.vmem [shape: bf16[64,32], index: 0, kind: input, shape index: {}]
  %s1 = inlined_call_operand.vmem [shape: bf16[64,32], index: 1, kind: input, shape index: {}]
  %s2 = inlined_call_operand.vmem [shape: bf16[64,32], index: 2, kind: input, shape index: {}]
  %s3 = inlined_call_operand.vmem [shape: bf16[64,64], index: 3, kind: input, shape index: {}]
  %s4 = inlined_call_operand.vmem [shape: bf16[64,64], index: 4, kind: input, shape index: {}]
  %s5 = inlined_call_operand.vmem [shape: bf16[64,64], index: 5, kind: input, shape index: {}]
  %s6 = inlined_call_operand.vmem [shape: bf16[3,32,128], index: 6, kind: input, shape index: {}]
  %s7 = inlined_call_operand.vmem [shape: f32[3,1,128], index: 7, kind: input, shape index: {}]
  %s8 = inlined_call_operand.vmem [shape: f32[64,128], index: 8, kind: output, shape index: {0}]
  %s9 = inlined_call_operand.vmem [shape: f32[64,128], index: 9, kind: output, shape index: {1}]
  %s10 = inlined_call_operand.vmem [shape: f32[64,128], index: 10, kind: output, shape index: {2}]
  %11 = xla_tuple %s8, %s9, %s10
  %s12 = sld [smem:[#allocation0]]
  $region58: #{gspectral_net.1} parent=0
    _
  %s14 = ssub.s32 1, %s12
  %s15 = scalar_select 0, %s14, %s12
  // Predicated region
  $region2: #{gspectral_net.1} parent=0 // pred_check
    _
  $region3: #{gspectral_net.1} parent=0 // pred_check_branch
    %17 = sbr.rel (0) target = $region5
  $region4: #{gspectral_net.1} parent=0 // pred_region
    _
  $region5: #{gspectral_net.1} parent=0 // pred_fallthru
    _
  // Predicated region
  $region6: #{gspectral_net.1} parent=0 // pred_check
    _
  $region7: #{gspectral_net.1} parent=0 // pred_check_branch
    %19 = sbr.rel (0) target = $region9
  $region8: #{gspectral_net.1} parent=0 // pred_region
    _
  $region9: #{gspectral_net.1} parent=0 // pred_fallthru
    _
  // Predicated region
  $region10: #{gspectral_net.1} parent=0 // pred_check
    _
  $region11: #{gspectral_net.1} parent=0 // pred_check_branch
    %21 = sbr.rel (0) target = $region13
  $region12: #{gspectral_net.1} parent=0 // pred_region
    _
  $region13: #{gspectral_net.1} parent=0 // pred_fallthru
    _
  // Predicated region
  $region14: #{gspectral_net.1} parent=0 // pred_check
    _
  $region15: #{gspectral_net.1} parent=0 // pred_check_branch
    %23 = sbr.rel (0) target = $region17
  $region16: #{gspectral_net.1} parent=0 // pred_region
    _
  $region17: #{gspectral_net.1} parent=0 // pred_fallthru
    _
  // Predicated region
  $region18: #{gspectral_net.1} parent=0 // pred_check
    _
  $region19: #{gspectral_net.1} parent=0 // pred_check_branch
    %25 = sbr.rel (0) target = $region21
  $region20: #{gspectral_net.1} parent=0 // pred_region
    _
  $region21: #{gspectral_net.1} parent=0 // pred_fallthru
    _
  // Predicated region
  $region22: #{gspectral_net.1} parent=0 // pred_check
    _
  $region23: #{gspectral_net.1} parent=0 // pred_check_branch
    %27 = sbr.rel (0) target = $region25
  $region24: #{gspectral_net.1} parent=0 // pred_region
    _
  $region25: #{gspectral_net.1} parent=0 // pred_fallthru
    _
  // Predicated region
  $region26: #{gspectral_net.1} parent=0 // pred_check
    _
  $region27: #{gspectral_net.1} parent=0 // pred_check_branch
    %29 = sbr.rel (0) target = $region29
  $region28: #{gspectral_net.1} parent=0 // pred_region
    _
  $region29: #{gspectral_net.1} parent=0 // pred_fallthru
    _
  // Predicated region
  $region30: #{gspectral_net.1} parent=0 // pred_check
    _
  $region31: #{gspectral_net.1} parent=0 // pred_check_branch
    %31 = sbr.rel (0) target = $region33
  $region32: #{gspectral_net.1} parent=0 // pred_region
    _
  $region33: #{gspectral_net.1} parent=0 // pred_fallthru
    _
  %v33 = vld [vmem:[%s0] sm:$0xf]
  %v34 = vld [vmem:[%s0 + $0x4] sm:$0xf]
  %v35 = vld [vmem:[%s0 + $0x8] sm:$0xf]
  %v36 = vld [vmem:[%s0 + $0xc] sm:$0xf]
  %v37 = vld [vmem:[%s0 + $0x10] sm:$0xf]
  %v38 = vld [vmem:[%s0 + $0x14] sm:$0xf]
  %v39 = vld [vmem:[%s0 + $0x18] sm:$0xf]
  %v40 = vld [vmem:[%s0 + $0x1c] sm:$0xf]
  %v41 = vld [vmem:[%s6] sm:$0xf]
  %v42 = vld [vmem:[%s6 + $0x4] sm:$0xf]
  %v43 = vld [vmem:[%s6 + $0x8] sm:$0xf]
  %v44 = vld [vmem:[%s6 + $0xc] sm:$0xf]
  %v45 = vld [vmem:[%s7] sm:$0x1]
  %v47 = vlaneseq
  %v48 = vshrl.u32 %v47, 7
  %v49 = vsub.s32 0, %v48
  %v50 = vrot.slane %v45, %v49
  %v60 = vunpack.c.l.b16 %v33
  %v61 = vunpack.c.l.b16 %v34
  %v62 = vunpack.c.l.b16 %v35
  %v63 = vunpack.c.l.b16 %v36
  %v64 = vunpack.c.l.b16 %v37
  %v65 = vunpack.c.l.b16 %v38
  %v66 = vunpack.c.l.b16 %v39
  %v67 = vunpack.c.l.b16 %v40
  %v68 = vpack.c.b16 %v61, %v60
  %v69 = vpack.c.b16 %v63, %v62
  %v70 = vpack.c.b16 %v65, %v64
  %v71 = vpack.c.b16 %v67, %v66
  %v76 = vunpack.c.l.b16 %v41
  %v77 = vunpack.c.l.b16 %v42
  %v78 = vunpack.c.l.b16 %v43
  %v79 = vunpack.c.l.b16 %v44
  %v80 = vpack.c.b16 %v77, %v76
  %v81 = vpack.c.b16 %v79, %v78
  %vm84 = vcmask 261120
  %v86 = vsel %vm84, %v68, 0
  %v89 = vsel %vm84, %v69, 0
  %v92 = vsel %vm84, %v70, 0
  %v95 = vsel %vm84, %v71, 0
  %97 = vmatprep.subr.bf16.mxu0 0
  %98 = vmatpush1.bf16.msra.mxu0 0
  %99 = vmatprep.subr.bf16.mxu0 0
  %100 = vmatpush1.bf16.msra.mxu0 0
  %101 = vmatprep.subr.bf16.mxu0 0
  %102 = vmatpush1.bf16.msra.mxu0 0
  %103 = vmatprep.subr.bf16.mxu0 0
  %104 = vmatpush1.bf16.msra.mxu0 0
  %105 = vmatprep.subr.bf16.mxu0 0
  %106 = vmatpush1.bf16.msra.mxu0 0
  %107 = vmatprep.subr.bf16.mxu0 0
  %108 = vmatpush1.bf16.msra.mxu0 0
  %109 = vmatprep.subr.bf16.mxu0 0
  %110 = vmatpush1.bf16.msra.mxu0 %v81
  %111 = vmatprep.subr.bf16.mxu0 0
  %112 = vmatpush1.bf16.msra.mxu0 %v80
  %113 = vmatprep.subr.bf16.mxu0 0
  %114 = vmatpush2.bf16.msra.mxu0 0
  %115 = vmatprep.subr.bf16.mxu0 0
  %116 = vmatpush2.bf16.msra.mxu0 0
  %117 = vmatprep.subr.bf16.mxu0 0
  %118 = vmatpush2.bf16.msra.mxu0 0
  %119 = vmatprep.subr.bf16.mxu0 0
  %120 = vmatpush2.bf16.msra.mxu0 0
  %121 = vmatprep.subr.bf16.mxu0 0
  %122 = vmatpush2.bf16.msra.mxu0 0
  %123 = vmatprep.subr.bf16.mxu0 0
  %124 = vmatpush2.bf16.msra.mxu0 0
  %125 = vmatprep.subr.bf16.mxu0 0
  %126 = vmatpush2.bf16.msra.mxu0 0
  %127 = vmatprep.subr.bf16.mxu0 0
  %128 = vmatpush2.bf16.msra.mxu0 0
  %129 = vmatprep.mubr.bf16.mxu0 0
  %130 = vmatmul.mubr.bf16.gmra.mxu0 %v86
  %v131 = vpop.f32.mrf.mxu0
  %v132 = vadd.f32 %v50, %v131
  %v133 = vpop.f32.mrf.mxu0
  %v134 = vpop.f32.mrf.mxu0
  %v135 = vadd.f32 %v50, %v134
  %v136 = vpop.f32.mrf.mxu0
  %137 = vmatprep.mubr.bf16.mxu0 0
  %138 = vmatmul.mubr.bf16.gmra.mxu0 %v89
  %v139 = vpop.f32.mrf.mxu0
  %v140 = vadd.f32 %v50, %v139
  %v141 = vpop.f32.mrf.mxu0
  %v142 = vpop.f32.mrf.mxu0
  %v143 = vadd.f32 %v50, %v142
  %v144 = vpop.f32.mrf.mxu0
  %145 = vmatprep.mubr.bf16.mxu0 0
  %146 = vmatmul.mubr.bf16.gmra.mxu0 %v92
  %v147 = vpop.f32.mrf.mxu0
  %v148 = vadd.f32 %v50, %v147
  %v149 = vpop.f32.mrf.mxu0
  %v150 = vpop.f32.mrf.mxu0
  %v151 = vadd.f32 %v50, %v150
  %v152 = vpop.f32.mrf.mxu0
  %153 = vmatprep.mubr.bf16.mxu0 0
  %154 = vmatmul.mubr.bf16.gmra.mxu0 %v95
  %v155 = vpop.f32.mrf.mxu0
  %v156 = vadd.f32 %v50, %v155
  %v157 = vpop.f32.mrf.mxu0
  %v158 = vpop.f32.mrf.mxu0
  %v159 = vadd.f32 %v50, %v158
  %v160 = vpop.f32.mrf.mxu0
  %161 = vdwg.mxu0
  %v162 = vld [vmem:[%s3] sm:$0xf]
  %v163 = vld [vmem:[%s3 + $0x4] sm:$0xf]
  %v164 = vld [vmem:[%s3 + $0x8] sm:$0xf]
  %v165 = vld [vmem:[%s3 + $0xc] sm:$0xf]
  %v166 = vld [vmem:[%s3 + $0x10] sm:$0xf]
  %v167 = vld [vmem:[%s3 + $0x14] sm:$0xf]
  %v168 = vld [vmem:[%s3 + $0x18] sm:$0xf]
  %v169 = vld [vmem:[%s3 + $0x1c] sm:$0xf]
  %v170 = vpack.c.bf16 %v135, %v132
  %v171 = vpack.c.bf16 %v143, %v140
  %v172 = vpack.c.bf16 %v151, %v148
  %v173 = vpack.c.bf16 %v159, %v156
  %v182 = vunpack.c.l.b16 %v162
  %v183 = vunpack.c.l.b16 %v163
  %v184 = vunpack.c.l.b16 %v164
  %v185 = vunpack.c.l.b16 %v165
  %v186 = vunpack.c.l.b16 %v166
  %v187 = vunpack.c.l.b16 %v167
  %v188 = vunpack.c.l.b16 %v168
  %v189 = vunpack.c.l.b16 %v169
  %v190 = vpack.c.b16 %v183, %v182
  %v191 = vpack.c.b16 %v185, %v184
  %v192 = vpack.c.b16 %v187, %v186
  %v193 = vpack.c.b16 %v189, %v188
  %vm194 = vcmask 523264
  %v196 = vsel %vm194, %v190, 0
  %v199 = vsel %vm194, %v191, 0
  %v202 = vsel %vm194, %v192, 0
  %v205 = vsel %vm194, %v193, 0
  %207 = vmatprep.subr.bf16.mxu0 0
  %208 = vmatpush1.bf16.msra.mxu0 0
  %209 = vmatprep.subr.bf16.mxu0 0
  %210 = vmatpush1.bf16.msra.mxu0 0
  %211 = vmatprep.subr.bf16.mxu0 0
  %212 = vmatpush1.bf16.msra.mxu0 0
  %213 = vmatprep.subr.bf16.mxu0 0
  %214 = vmatpush1.bf16.msra.mxu0 0
  %215 = vmatprep.subr.bf16.mxu0 0
  %216 = vmatpush1.bf16.msra.mxu0 %v173
  %217 = vmatprep.subr.bf16.mxu0 0
  %218 = vmatpush1.bf16.msra.mxu0 %v172
  %219 = vmatprep.subr.bf16.mxu0 0
  %220 = vmatpush1.bf16.msra.mxu0 %v171
  %221 = vmatprep.subr.bf16.mxu0 0
  %222 = vmatpush1.bf16.msra.mxu0 %v170
  %223 = vmatprep.subr.bf16.mxu0 0
  %224 = vmatpush2.bf16.msra.mxu0 0
  %225 = vmatprep.subr.bf16.mxu0 0
  %226 = vmatpush2.bf16.msra.mxu0 0
  %227 = vmatprep.subr.bf16.mxu0 0
  %228 = vmatpush2.bf16.msra.mxu0 0
  %229 = vmatprep.subr.bf16.mxu0 0
  %230 = vmatpush2.bf16.msra.mxu0 0
  %231 = vmatprep.subr.bf16.mxu0 0
  %232 = vmatpush2.bf16.msra.mxu0 0
  %233 = vmatprep.subr.bf16.mxu0 0
  %234 = vmatpush2.bf16.msra.mxu0 0
  %235 = vmatprep.subr.bf16.mxu0 0
  %236 = vmatpush2.bf16.msra.mxu0 0
  %237 = vmatprep.subr.bf16.mxu0 0
  %238 = vmatpush2.bf16.msra.mxu0 0
  %239 = vmatprep.mubr.bf16.mxu0 0
  %240 = vmatmul.mubr.bf16.gmra.mxu0 %v196
  %v241 = vpop.f32.mrf.mxu0
  %v242 = vadd.f32 0.0, %v241
  %v243 = vpop.f32.mrf.mxu0
  %v244 = vpop.f32.mrf.mxu0
  %v245 = vadd.f32 0.0, %v244
  %v246 = vpop.f32.mrf.mxu0
  %247 = vmatprep.mubr.bf16.mxu0 0
  %248 = vmatmul.mubr.bf16.gmra.mxu0 %v199
  %v249 = vpop.f32.mrf.mxu0
  %v250 = vadd.f32 0.0, %v249
  %v251 = vpop.f32.mrf.mxu0
  %v252 = vpop.f32.mrf.mxu0
  %v253 = vadd.f32 0.0, %v252
  %v254 = vpop.f32.mrf.mxu0
  %255 = vmatprep.mubr.bf16.mxu0 0
  %256 = vmatmul.mubr.bf16.gmra.mxu0 %v202
  %v257 = vpop.f32.mrf.mxu0
  %v258 = vadd.f32 0.0, %v257
  %v259 = vpop.f32.mrf.mxu0
  %v260 = vpop.f32.mrf.mxu0
  %v261 = vadd.f32 0.0, %v260
  %v262 = vpop.f32.mrf.mxu0
  %263 = vmatprep.mubr.bf16.mxu0 0
  %264 = vmatmul.mubr.bf16.gmra.mxu0 %v205
  %v265 = vpop.f32.mrf.mxu0
  %v266 = vadd.f32 0.0, %v265
  %v267 = vpop.f32.mrf.mxu0
  %v268 = vpop.f32.mrf.mxu0
  %v269 = vadd.f32 0.0, %v268
  %v270 = vpop.f32.mrf.mxu0
  %271 = vdwg.mxu0
  %272 = vst [vmem:[%s8] sm:$0xff] %v242
  %273 = vst [vmem:[%s8 + $0x8] sm:$0xff] %v245
  %274 = vst [vmem:[%s8 + $0x10] sm:$0xff] %v250
  %275 = vst [vmem:[%s8 + $0x18] sm:$0xff] %v253
  %276 = vst [vmem:[%s8 + $0x20] sm:$0xff] %v258
  %277 = vst [vmem:[%s8 + $0x28] sm:$0xff] %v261
  %278 = vst [vmem:[%s8 + $0x30] sm:$0xff] %v266
  %279 = vst [vmem:[%s8 + $0x38] sm:$0xff] %v269
  %v280 = vld [vmem:[%s1] sm:$0xf]
  %v281 = vld [vmem:[%s1 + $0x4] sm:$0xf]
  %v282 = vld [vmem:[%s1 + $0x8] sm:$0xf]
  %v283 = vld [vmem:[%s1 + $0xc] sm:$0xf]
  %v284 = vld [vmem:[%s1 + $0x10] sm:$0xf]
  %v285 = vld [vmem:[%s1 + $0x14] sm:$0xf]
  %v286 = vld [vmem:[%s1 + $0x18] sm:$0xf]
  %v287 = vld [vmem:[%s1 + $0x1c] sm:$0xf]
  %s288 = scalar_lea.vmem %s6, 16
  %v289 = vld [vmem:[%s288] sm:$0xf]
  %v290 = vld [vmem:[%s288 + $0x4] sm:$0xf]
  %v291 = vld [vmem:[%s288 + $0x8] sm:$0xf]
  %v292 = vld [vmem:[%s288 + $0xc] sm:$0xf]
  %s293 = scalar_lea.vmem %s7, 1
  %v294 = vld [vmem:[%s293] sm:$0x1]
  %v296 = vlaneseq
  %v297 = vshrl.u32 %v296, 7
  %v298 = vsub.s32 0, %v297
  %v299 = vrot.slane %v294, %v298
  %v309 = vunpack.c.l.b16 %v280
  %v310 = vunpack.c.l.b16 %v281
  %v311 = vunpack.c.l.b16 %v282
  %v312 = vunpack.c.l.b16 %v283
  %v313 = vunpack.c.l.b16 %v284
  %v314 = vunpack.c.l.b16 %v285
  %v315 = vunpack.c.l.b16 %v286
  %v316 = vunpack.c.l.b16 %v287
  %v317 = vpack.c.b16 %v310, %v309
  %v318 = vpack.c.b16 %v312, %v311
  %v319 = vpack.c.b16 %v314, %v313
  %v320 = vpack.c.b16 %v316, %v315
  %v325 = vunpack.c.l.b16 %v289
  %v326 = vunpack.c.l.b16 %v290
  %v327 = vunpack.c.l.b16 %v291
  %v328 = vunpack.c.l.b16 %v292
  %v329 = vpack.c.b16 %v326, %v325
  %v330 = vpack.c.b16 %v328, %v327
  %v334 = vsel %vm84, %v317, 0
  %v337 = vsel %vm84, %v318, 0
  %v340 = vsel %vm84, %v319, 0
  %v343 = vsel %vm84, %v320, 0
  %345 = vmatprep.subr.bf16.mxu0 0
  %346 = vmatpush1.bf16.msra.mxu0 0
  %347 = vmatprep.subr.bf16.mxu0 0
  %348 = vmatpush1.bf16.msra.mxu0 0
  %349 = vmatprep.subr.bf16.mxu0 0
  %350 = vmatpush1.bf16.msra.mxu0 0
  %351 = vmatprep.subr.bf16.mxu0 0
  %352 = vmatpush1.bf16.msra.mxu0 0
  %353 = vmatprep.subr.bf16.mxu0 0
  %354 = vmatpush1.bf16.msra.mxu0 0
  %355 = vmatprep.subr.bf16.mxu0 0
  %356 = vmatpush1.bf16.msra.mxu0 0
  %357 = vmatprep.subr.bf16.mxu0 0
  %358 = vmatpush1.bf16.msra.mxu0 %v330
  %359 = vmatprep.subr.bf16.mxu0 0
  %360 = vmatpush1.bf16.msra.mxu0 %v329
  %361 = vmatprep.subr.bf16.mxu0 0
  %362 = vmatpush2.bf16.msra.mxu0 0
  %363 = vmatprep.subr.bf16.mxu0 0
  %364 = vmatpush2.bf16.msra.mxu0 0
  %365 = vmatprep.subr.bf16.mxu0 0
  %366 = vmatpush2.bf16.msra.mxu0 0
  %367 = vmatprep.subr.bf16.mxu0 0
  %368 = vmatpush2.bf16.msra.mxu0 0
  %369 = vmatprep.subr.bf16.mxu0 0
  %370 = vmatpush2.bf16.msra.mxu0 0
  %371 = vmatprep.subr.bf16.mxu0 0
  %372 = vmatpush2.bf16.msra.mxu0 0
  %373 = vmatprep.subr.bf16.mxu0 0
  %374 = vmatpush2.bf16.msra.mxu0 0
  %375 = vmatprep.subr.bf16.mxu0 0
  %376 = vmatpush2.bf16.msra.mxu0 0
  %377 = vmatprep.mubr.bf16.mxu0 0
  %378 = vmatmul.mubr.bf16.gmra.mxu0 %v334
  %v379 = vpop.f32.mrf.mxu0
  %v380 = vadd.f32 %v299, %v379
  %v381 = vpop.f32.mrf.mxu0
  %v382 = vpop.f32.mrf.mxu0
  %v383 = vadd.f32 %v299, %v382
  %v384 = vpop.f32.mrf.mxu0
  %385 = vmatprep.mubr.bf16.mxu0 0
  %386 = vmatmul.mubr.bf16.gmra.mxu0 %v337
  %v387 = vpop.f32.mrf.mxu0
  %v388 = vadd.f32 %v299, %v387
  %v389 = vpop.f32.mrf.mxu0
  %v390 = vpop.f32.mrf.mxu0
  %v391 = vadd.f32 %v299, %v390
  %v392 = vpop.f32.mrf.mxu0
  %393 = vmatprep.mubr.bf16.mxu0 0
  %394 = vmatmul.mubr.bf16.gmra.mxu0 %v340
  %v395 = vpop.f32.mrf.mxu0
  %v396 = vadd.f32 %v299, %v395
  %v397 = vpop.f32.mrf.mxu0
  %v398 = vpop.f32.mrf.mxu0
  %v399 = vadd.f32 %v299, %v398
  %v400 = vpop.f32.mrf.mxu0
  %401 = vmatprep.mubr.bf16.mxu0 0
  %402 = vmatmul.mubr.bf16.gmra.mxu0 %v343
  %v403 = vpop.f32.mrf.mxu0
  %v404 = vadd.f32 %v299, %v403
  %v405 = vpop.f32.mrf.mxu0
  %v406 = vpop.f32.mrf.mxu0
  %v407 = vadd.f32 %v299, %v406
  %v408 = vpop.f32.mrf.mxu0
  %409 = vdwg.mxu0
  %v410 = vld [vmem:[%s4] sm:$0xf]
  %v411 = vld [vmem:[%s4 + $0x4] sm:$0xf]
  %v412 = vld [vmem:[%s4 + $0x8] sm:$0xf]
  %v413 = vld [vmem:[%s4 + $0xc] sm:$0xf]
  %v414 = vld [vmem:[%s4 + $0x10] sm:$0xf]
  %v415 = vld [vmem:[%s4 + $0x14] sm:$0xf]
  %v416 = vld [vmem:[%s4 + $0x18] sm:$0xf]
  %v417 = vld [vmem:[%s4 + $0x1c] sm:$0xf]
  %v418 = vpack.c.bf16 %v383, %v380
  %v419 = vpack.c.bf16 %v391, %v388
  %v420 = vpack.c.bf16 %v399, %v396
  %v421 = vpack.c.bf16 %v407, %v404
  %v430 = vunpack.c.l.b16 %v410
  %v431 = vunpack.c.l.b16 %v411
  %v432 = vunpack.c.l.b16 %v412
  %v433 = vunpack.c.l.b16 %v413
  %v434 = vunpack.c.l.b16 %v414
  %v435 = vunpack.c.l.b16 %v415
  %v436 = vunpack.c.l.b16 %v416
  %v437 = vunpack.c.l.b16 %v417
  %v438 = vpack.c.b16 %v431, %v430
  %v439 = vpack.c.b16 %v433, %v432
  %v440 = vpack.c.b16 %v435, %v434
  %v441 = vpack.c.b16 %v437, %v436
  %v443 = vsel %vm194, %v438, 0
  %v446 = vsel %vm194, %v439, 0
  %v449 = vsel %vm194, %v440, 0
  %v452 = vsel %vm194, %v441, 0
  %454 = vmatprep.subr.bf16.mxu0 0
  %455 = vmatpush1.bf16.msra.mxu0 0
  %456 = vmatprep.subr.bf16.mxu0 0
  %457 = vmatpush1.bf16.msra.mxu0 0
  %458 = vmatprep.subr.bf16.mxu0 0
  %459 = vmatpush1.bf16.msra.mxu0 0
  %460 = vmatprep.subr.bf16.mxu0 0
  %461 = vmatpush1.bf16.msra.mxu0 0
  %462 = vmatprep.subr.bf16.mxu0 0
  %463 = vmatpush1.bf16.msra.mxu0 %v421
  %464 = vmatprep.subr.bf16.mxu0 0
  %465 = vmatpush1.bf16.msra.mxu0 %v420
  %466 = vmatprep.subr.bf16.mxu0 0
  %467 = vmatpush1.bf16.msra.mxu0 %v419
  %468 = vmatprep.subr.bf16.mxu0 0
  %469 = vmatpush1.bf16.msra.mxu0 %v418
  %470 = vmatprep.subr.bf16.mxu0 0
  %471 = vmatpush2.bf16.msra.mxu0 0
  %472 = vmatprep.subr.bf16.mxu0 0
  %473 = vmatpush2.bf16.msra.mxu0 0
  %474 = vmatprep.subr.bf16.mxu0 0
  %475 = vmatpush2.bf16.msra.mxu0 0
  %476 = vmatprep.subr.bf16.mxu0 0
  %477 = vmatpush2.bf16.msra.mxu0 0
  %478 = vmatprep.subr.bf16.mxu0 0
  %479 = vmatpush2.bf16.msra.mxu0 0
  %480 = vmatprep.subr.bf16.mxu0 0
  %481 = vmatpush2.bf16.msra.mxu0 0
  %482 = vmatprep.subr.bf16.mxu0 0
  %483 = vmatpush2.bf16.msra.mxu0 0
  %484 = vmatprep.subr.bf16.mxu0 0
  %485 = vmatpush2.bf16.msra.mxu0 0
  %486 = vmatprep.mubr.bf16.mxu0 0
  %487 = vmatmul.mubr.bf16.gmra.mxu0 %v443
  %v488 = vpop.f32.mrf.mxu0
  %v489 = vadd.f32 0.0, %v488
  %v490 = vpop.f32.mrf.mxu0
  %v491 = vpop.f32.mrf.mxu0
  %v492 = vadd.f32 0.0, %v491
  %v493 = vpop.f32.mrf.mxu0
  %494 = vmatprep.mubr.bf16.mxu0 0
  %495 = vmatmul.mubr.bf16.gmra.mxu0 %v446
  %v496 = vpop.f32.mrf.mxu0
  %v497 = vadd.f32 0.0, %v496
  %v498 = vpop.f32.mrf.mxu0
  %v499 = vpop.f32.mrf.mxu0
  %v500 = vadd.f32 0.0, %v499
  %v501 = vpop.f32.mrf.mxu0
  %502 = vmatprep.mubr.bf16.mxu0 0
  %503 = vmatmul.mubr.bf16.gmra.mxu0 %v449
  %v504 = vpop.f32.mrf.mxu0
  %v505 = vadd.f32 0.0, %v504
  %v506 = vpop.f32.mrf.mxu0
  %v507 = vpop.f32.mrf.mxu0
  %v508 = vadd.f32 0.0, %v507
  %v509 = vpop.f32.mrf.mxu0
  %510 = vmatprep.mubr.bf16.mxu0 0
  %511 = vmatmul.mubr.bf16.gmra.mxu0 %v452
  %v512 = vpop.f32.mrf.mxu0
  %v513 = vadd.f32 0.0, %v512
  %v514 = vpop.f32.mrf.mxu0
  %v515 = vpop.f32.mrf.mxu0
  %v516 = vadd.f32 0.0, %v515
  %v517 = vpop.f32.mrf.mxu0
  %518 = vdwg.mxu0
  %519 = vst [vmem:[%s9] sm:$0xff] %v489
  %520 = vst [vmem:[%s9 + $0x8] sm:$0xff] %v492
  %521 = vst [vmem:[%s9 + $0x10] sm:$0xff] %v497
  %522 = vst [vmem:[%s9 + $0x18] sm:$0xff] %v500
  %523 = vst [vmem:[%s9 + $0x20] sm:$0xff] %v505
  %524 = vst [vmem:[%s9 + $0x28] sm:$0xff] %v508
  %525 = vst [vmem:[%s9 + $0x30] sm:$0xff] %v513
  %526 = vst [vmem:[%s9 + $0x38] sm:$0xff] %v516
  %v527 = vld [vmem:[%s2] sm:$0xf]
  %v528 = vld [vmem:[%s2 + $0x4] sm:$0xf]
  %v529 = vld [vmem:[%s2 + $0x8] sm:$0xf]
  %v530 = vld [vmem:[%s2 + $0xc] sm:$0xf]
  %v531 = vld [vmem:[%s2 + $0x10] sm:$0xf]
  %v532 = vld [vmem:[%s2 + $0x14] sm:$0xf]
  %v533 = vld [vmem:[%s2 + $0x18] sm:$0xf]
  %v534 = vld [vmem:[%s2 + $0x1c] sm:$0xf]
  %s535 = scalar_lea.vmem %s6, 32
  %v536 = vld [vmem:[%s535] sm:$0xf]
  %v537 = vld [vmem:[%s535 + $0x4] sm:$0xf]
  %v538 = vld [vmem:[%s535 + $0x8] sm:$0xf]
  %v539 = vld [vmem:[%s535 + $0xc] sm:$0xf]
  %s540 = scalar_lea.vmem %s7, 2
  %v541 = vld [vmem:[%s540] sm:$0x1]
  %v543 = vlaneseq
  %v544 = vshrl.u32 %v543, 7
  %v545 = vsub.s32 0, %v544
  %v546 = vrot.slane %v541, %v545
  %v556 = vunpack.c.l.b16 %v527
  %v557 = vunpack.c.l.b16 %v528
  %v558 = vunpack.c.l.b16 %v529
  %v559 = vunpack.c.l.b16 %v530
  %v560 = vunpack.c.l.b16 %v531
  %v561 = vunpack.c.l.b16 %v532
  %v562 = vunpack.c.l.b16 %v533
  %v563 = vunpack.c.l.b16 %v534
  %v564 = vpack.c.b16 %v557, %v556
  %v565 = vpack.c.b16 %v559, %v558
  %v566 = vpack.c.b16 %v561, %v560
  %v567 = vpack.c.b16 %v563, %v562
  %v572 = vunpack.c.l.b16 %v536
  %v573 = vunpack.c.l.b16 %v537
  %v574 = vunpack.c.l.b16 %v538
  %v575 = vunpack.c.l.b16 %v539
  %v576 = vpack.c.b16 %v573, %v572
  %v577 = vpack.c.b16 %v575, %v574
  %v581 = vsel %vm84, %v564, 0
  %v584 = vsel %vm84, %v565, 0
  %v587 = vsel %vm84, %v566, 0
  %v590 = vsel %vm84, %v567, 0
  %592 = vmatprep.subr.bf16.mxu0 0
  %593 = vmatpush1.bf16.msra.mxu0 0
  %594 = vmatprep.subr.bf16.mxu0 0
  %595 = vmatpush1.bf16.msra.mxu0 0
  %596 = vmatprep.subr.bf16.mxu0 0
  %597 = vmatpush1.bf16.msra.mxu0 0
  %598 = vmatprep.subr.bf16.mxu0 0
  %599 = vmatpush1.bf16.msra.mxu0 0
  %600 = vmatprep.subr.bf16.mxu0 0
  %601 = vmatpush1.bf16.msra.mxu0 0
  %602 = vmatprep.subr.bf16.mxu0 0
  %603 = vmatpush1.bf16.msra.mxu0 0
  %604 = vmatprep.subr.bf16.mxu0 0
  %605 = vmatpush1.bf16.msra.mxu0 %v577
  %606 = vmatprep.subr.bf16.mxu0 0
  %607 = vmatpush1.bf16.msra.mxu0 %v576
  %608 = vmatprep.subr.bf16.mxu0 0
  %609 = vmatpush2.bf16.msra.mxu0 0
  %610 = vmatprep.subr.bf16.mxu0 0
  %611 = vmatpush2.bf16.msra.mxu0 0
  %612 = vmatprep.subr.bf16.mxu0 0
  %613 = vmatpush2.bf16.msra.mxu0 0
  %614 = vmatprep.subr.bf16.mxu0 0
  %615 = vmatpush2.bf16.msra.mxu0 0
  %616 = vmatprep.subr.bf16.mxu0 0
  %617 = vmatpush2.bf16.msra.mxu0 0
  %618 = vmatprep.subr.bf16.mxu0 0
  %619 = vmatpush2.bf16.msra.mxu0 0
  %620 = vmatprep.subr.bf16.mxu0 0
  %621 = vmatpush2.bf16.msra.mxu0 0
  %622 = vmatprep.subr.bf16.mxu0 0
  %623 = vmatpush2.bf16.msra.mxu0 0
  %624 = vmatprep.mubr.bf16.mxu0 0
  %625 = vmatmul.mubr.bf16.gmra.mxu0 %v581
  %v626 = vpop.f32.mrf.mxu0
  %v627 = vadd.f32 %v546, %v626
  %v628 = vpop.f32.mrf.mxu0
  %v629 = vpop.f32.mrf.mxu0
  %v630 = vadd.f32 %v546, %v629
  %v631 = vpop.f32.mrf.mxu0
  %632 = vmatprep.mubr.bf16.mxu0 0
  %633 = vmatmul.mubr.bf16.gmra.mxu0 %v584
  %v634 = vpop.f32.mrf.mxu0
  %v635 = vadd.f32 %v546, %v634
  %v636 = vpop.f32.mrf.mxu0
  %v637 = vpop.f32.mrf.mxu0
  %v638 = vadd.f32 %v546, %v637
  %v639 = vpop.f32.mrf.mxu0
  %640 = vmatprep.mubr.bf16.mxu0 0
  %641 = vmatmul.mubr.bf16.gmra.mxu0 %v587
  %v642 = vpop.f32.mrf.mxu0
  %v643 = vadd.f32 %v546, %v642
  %v644 = vpop.f32.mrf.mxu0
  %v645 = vpop.f32.mrf.mxu0
  %v646 = vadd.f32 %v546, %v645
  %v647 = vpop.f32.mrf.mxu0
  %648 = vmatprep.mubr.bf16.mxu0 0
  %649 = vmatmul.mubr.bf16.gmra.mxu0 %v590
  %v650 = vpop.f32.mrf.mxu0
  %v651 = vadd.f32 %v546, %v650
  %v652 = vpop.f32.mrf.mxu0
  %v653 = vpop.f32.mrf.mxu0
  %v654 = vadd.f32 %v546, %v653
  %v655 = vpop.f32.mrf.mxu0
  %656 = vdwg.mxu0
  %v657 = vld [vmem:[%s5] sm:$0xf]
  %v658 = vld [vmem:[%s5 + $0x4] sm:$0xf]
  %v659 = vld [vmem:[%s5 + $0x8] sm:$0xf]
  %v660 = vld [vmem:[%s5 + $0xc] sm:$0xf]
  %v661 = vld [vmem:[%s5 + $0x10] sm:$0xf]
  %v662 = vld [vmem:[%s5 + $0x14] sm:$0xf]
  %v663 = vld [vmem:[%s5 + $0x18] sm:$0xf]
  %v664 = vld [vmem:[%s5 + $0x1c] sm:$0xf]
  %v665 = vpack.c.bf16 %v630, %v627
  %v666 = vpack.c.bf16 %v638, %v635
  %v667 = vpack.c.bf16 %v646, %v643
  %v668 = vpack.c.bf16 %v654, %v651
  %v677 = vunpack.c.l.b16 %v657
  %v678 = vunpack.c.l.b16 %v658
  %v679 = vunpack.c.l.b16 %v659
  %v680 = vunpack.c.l.b16 %v660
  %v681 = vunpack.c.l.b16 %v661
  %v682 = vunpack.c.l.b16 %v662
  %v683 = vunpack.c.l.b16 %v663
  %v684 = vunpack.c.l.b16 %v664
  %v685 = vpack.c.b16 %v678, %v677
  %v686 = vpack.c.b16 %v680, %v679
  %v687 = vpack.c.b16 %v682, %v681
  %v688 = vpack.c.b16 %v684, %v683
  %v690 = vsel %vm194, %v685, 0
  %v693 = vsel %vm194, %v686, 0
  %v696 = vsel %vm194, %v687, 0
  %v699 = vsel %vm194, %v688, 0
  %701 = vmatprep.subr.bf16.mxu0 0
  %702 = vmatpush1.bf16.msra.mxu0 0
  %703 = vmatprep.subr.bf16.mxu0 0
  %704 = vmatpush1.bf16.msra.mxu0 0
  %705 = vmatprep.subr.bf16.mxu0 0
  %706 = vmatpush1.bf16.msra.mxu0 0
  %707 = vmatprep.subr.bf16.mxu0 0
  %708 = vmatpush1.bf16.msra.mxu0 0
  %709 = vmatprep.subr.bf16.mxu0 0
  %710 = vmatpush1.bf16.msra.mxu0 %v668
  %711 = vmatprep.subr.bf16.mxu0 0
  %712 = vmatpush1.bf16.msra.mxu0 %v667
  %713 = vmatprep.subr.bf16.mxu0 0
  %714 = vmatpush1.bf16.msra.mxu0 %v666
  %715 = vmatprep.subr.bf16.mxu0 0
  %716 = vmatpush1.bf16.msra.mxu0 %v665
  %717 = vmatprep.subr.bf16.mxu0 0
  %718 = vmatpush2.bf16.msra.mxu0 0
  %719 = vmatprep.subr.bf16.mxu0 0
  %720 = vmatpush2.bf16.msra.mxu0 0
  %721 = vmatprep.subr.bf16.mxu0 0
  %722 = vmatpush2.bf16.msra.mxu0 0
  %723 = vmatprep.subr.bf16.mxu0 0
  %724 = vmatpush2.bf16.msra.mxu0 0
  %725 = vmatprep.subr.bf16.mxu0 0
  %726 = vmatpush2.bf16.msra.mxu0 0
  %727 = vmatprep.subr.bf16.mxu0 0
  %728 = vmatpush2.bf16.msra.mxu0 0
  %729 = vmatprep.subr.bf16.mxu0 0
  %730 = vmatpush2.bf16.msra.mxu0 0
  %731 = vmatprep.subr.bf16.mxu0 0
  %732 = vmatpush2.bf16.msra.mxu0 0
  %733 = vmatprep.mubr.bf16.mxu0 0
  %734 = vmatmul.mubr.bf16.gmra.mxu0 %v690
  %v735 = vpop.f32.mrf.mxu0
  %v736 = vadd.f32 0.0, %v735
  %v737 = vpop.f32.mrf.mxu0
  %v738 = vpop.f32.mrf.mxu0
  %v739 = vadd.f32 0.0, %v738
  %v740 = vpop.f32.mrf.mxu0
  %741 = vmatprep.mubr.bf16.mxu0 0
  %742 = vmatmul.mubr.bf16.gmra.mxu0 %v693
  %v743 = vpop.f32.mrf.mxu0
  %v744 = vadd.f32 0.0, %v743
  %v745 = vpop.f32.mrf.mxu0
  %v746 = vpop.f32.mrf.mxu0
  %v747 = vadd.f32 0.0, %v746
  %v748 = vpop.f32.mrf.mxu0
  %749 = vmatprep.mubr.bf16.mxu0 0
  %750 = vmatmul.mubr.bf16.gmra.mxu0 %v696
  %v751 = vpop.f32.mrf.mxu0
  %v752 = vadd.f32 0.0, %v751
  %v753 = vpop.f32.mrf.mxu0
  %v754 = vpop.f32.mrf.mxu0
  %v755 = vadd.f32 0.0, %v754
  %v756 = vpop.f32.mrf.mxu0
  %757 = vmatprep.mubr.bf16.mxu0 0
  %758 = vmatmul.mubr.bf16.gmra.mxu0 %v699
  %v759 = vpop.f32.mrf.mxu0
  %v760 = vadd.f32 0.0, %v759
  %v761 = vpop.f32.mrf.mxu0
  %v762 = vpop.f32.mrf.mxu0
  %v763 = vadd.f32 0.0, %v762
  %v764 = vpop.f32.mrf.mxu0
  %765 = vdwg.mxu0
  %766 = vst [vmem:[%s10] sm:$0xff] %v736
  %767 = vst [vmem:[%s10 + $0x8] sm:$0xff] %v739
  %768 = vst [vmem:[%s10 + $0x10] sm:$0xff] %v744
  %769 = vst [vmem:[%s10 + $0x18] sm:$0xff] %v747
  %770 = vst [vmem:[%s10 + $0x20] sm:$0xff] %v752
  %771 = vst [vmem:[%s10 + $0x28] sm:$0xff] %v755
  %772 = vst [vmem:[%s10 + $0x30] sm:$0xff] %v760
  %773 = vst [vmem:[%s10 + $0x38] sm:$0xff] %v763
  // Predicated region
  $region34: #{gspectral_net.1} parent=0 // pred_check
    _
  $region35: #{gspectral_net.1} parent=0 // pred_check_branch
    %775 = sbr.rel (0) target = $region37
  $region36: #{gspectral_net.1} parent=0 // pred_region
    _
  $region37: #{gspectral_net.1} parent=0 // pred_fallthru
    _
  // Predicated region
  $region38: #{gspectral_net.1} parent=0 // pred_check
    _
  $region39: #{gspectral_net.1} parent=0 // pred_check_branch
    %777 = sbr.rel (0) target = $region41
  $region40: #{gspectral_net.1} parent=0 // pred_region
    _
  $region41: #{gspectral_net.1} parent=0 // pred_fallthru
    _
  // Predicated region
  $region42: #{gspectral_net.1} parent=0 // pred_check
    _
  $region43: #{gspectral_net.1} parent=0 // pred_check_branch
    %779 = sbr.rel (0) target = $region45
  $region44: #{gspectral_net.1} parent=0 // pred_region
    _
  $region45: #{gspectral_net.1} parent=0 // pred_fallthru
    _
  // Predicated region
  $region46: #{gspectral_net.1} parent=0 // pred_check
    _
  $region47: #{gspectral_net.1} parent=0 // pred_check_branch
    %781 = sbr.rel (0) target = $region49
  $region48: #{gspectral_net.1} parent=0 // pred_region
    _
  $region49: #{gspectral_net.1} parent=0 // pred_fallthru
    _
  // Predicated region
  $region50: #{gspectral_net.1} parent=0 // pred_check
    _
  $region51: #{gspectral_net.1} parent=0 // pred_check_branch
    %783 = sbr.rel (0) target = $region53
  $region52: #{gspectral_net.1} parent=0 // pred_region
    _
  $region53: #{gspectral_net.1} parent=0 // pred_fallthru
    _
  // Predicated region
  $region54: #{gspectral_net.1} parent=0 // pred_check
    _
  $region55: #{gspectral_net.1} parent=0 // pred_check_branch
    %785 = sbr.rel (0) target = $region57
  $region56: #{gspectral_net.1} parent=0 // pred_region
    _
  $region57: #{gspectral_net.1} parent=0 // pred_fallthru
    _

</llo_original>
